<compile_context>
chip_gen: v6e
topology: v6e:2x2x1
jax: 0.10.0
libtpu: 0.0.40
codegen_flags: <defaults>
</compile_context>

<pallas_src>
import functools

import jax
import jax.numpy as jnp
from jax import lax
from jax.experimental import pallas as pl
from jax.experimental.pallas import tpu as pltpu


EPS = 1e-5          # nn.InstanceNorm2d default
NEG_SLOPE = 0.01    # nn.LeakyReLU() default


def _downsample_kernel(p_ref, w_ref, o_ref, s_ref, ss_ref, *, true_p):
    # p_ref : (1, CK, TP)    bf16 im2col patches tile (one sample, one P tile)
    # w_ref : (TC, CK)       bf16 flattened conv-weight tile (resident across pt)
    # o_ref : (1, TC, Pp)    f32 output block, VMEM-resident across the pt axis
    # s_ref, ss_ref : (TC, 1) f32 running sum / sum-of-squares
    pt = pl.program_id(2)
    n_pt = pl.num_programs(2)

    @pl.when(pt == 0)
    def _init():
        s_ref[...] = jnp.zeros_like(s_ref)
        ss_ref[...] = jnp.zeros_like(ss_ref)

    # MXU matmul: (TC, CK) @ (CK, TP) -> (TC, TP), f32 accumulation.
    conv = jnp.dot(w_ref[...], p_ref[0], preferred_element_type=jnp.float32)

    # Fused single-pass statistics (lane reductions -> XLU slot).
    # Zero-padded spatial positions contribute exactly 0 to both sums.
    s_ref[...] += jnp.sum(conv, axis=1, keepdims=True)
    ss_ref[...] += jnp.sum(conv * conv, axis=1, keepdims=True)

    tp = conv.shape[1]
    start = pl.multiple_of(pt * tp, tp)
    o_ref[0, :, pl.ds(start, tp)] = conv

    @pl.when(pt == n_pt - 1)
    def _finalize():
        inv_p = 1.0 / true_p                              # TRUE Ho*Wo, not padded Pp
        mean = s_ref[...] * inv_p                         # (TC, 1)
        var = jnp.maximum(ss_ref[...] * inv_p - mean * mean, 0.0)
        inv_std = lax.rsqrt(var + EPS)

        # Chunked normalize + LeakyReLU over TP-wide lane slices of the
        # resident output (bounds vreg live ranges / store pressure).
        def body(i, carry):
            st = pl.multiple_of(i * tp, tp)
            blk = o_ref[0, :, pl.ds(st, tp)]
            normed = (blk - mean) * inv_std
            o_ref[0, :, pl.ds(st, tp)] = jnp.where(
                normed > 0, normed, NEG_SLOPE * normed)
            return carry

        lax.fori_loop(0, n_pt, body, 0)


def extract_patches_nchw_t(x, kernel_size, stride, padding, dtype=jnp.bfloat16):
    """im2col, transposed layout: (N, C, H, W) -> (N, C*K*K, Ho*Wo) in `dtype`.

    Built directly in (N, C, K*K, Ho, Wo) order (no XLA transpose of the full
    patches tensor).  CK axis order is (C, kh, kw) with kw fastest, matching
    weight.reshape(Cout, CK).
    """
    N, C, H, W = x.shape
    K, S, Pd = kernel_size, stride, padding
    Ho = (H + 2 * Pd - K) // S + 1
    Wo = (W + 2 * Pd - K) // S + 1
    xp = jnp.pad(x, ((0, 0), (0, 0), (Pd, Pd), (Pd, Pd))).astype(dtype)
    slabs = [xp[:, :, kh:kh + S * Ho:S, kw:kw + S * Wo:S]   # (N, C, Ho, Wo)
             for kh in range(K) for kw in range(K)]
    pk = jnp.stack(slabs, axis=2)                           # (N, C, K*K, Ho, Wo)
    return pk.reshape(N, C * K * K, Ho * Wo), Ho, Wo


def _round_up(v, m):
    return ((v + m - 1) // m) * m


def _choose_tile_p(pp, max_tp=512):
    """Largest 128-multiple tile <= max_tp that divides Pp (Pp is a 128 multiple).

    max_tp=512 is the conservative cross-generation choice (v5e's single vst
    slot binds the f32 epilogue first); sweep 1024 on v6e/v7x if compute-bound.
    """
    if pp <= max_tp:
        return pp
    for tp in range(max_tp, 127, -128):
        if pp % tp == 0:
            return tp
    return 128


def _vmem_limit_bytes():
    """Generation-aware VMEM budget: ~96 MiB on 128 MiB parts, ~48 MiB on v7x."""
    cap = None
    try:
        info = pltpu.get_tpu_info()
        cap = getattr(info, "vmem_capacity_bytes", None)
    except Exception:
        cap = None
    if not cap:
        return 48 * 1024 * 1024
    return int(min(96 * 1024 * 1024, cap * 3 // 4))


def downsample_pallas(x, weight, kernel_size=4, stride=2, padding=1,
                      patches_dtype=jnp.bfloat16):
    """x: (N, Cin, H, W) f32; weight: (Cout, Cin, K, K) f32 -> (N, Cout, Ho, Wo) f32.

    Accuracy note: activations are fed to the MXU in `patches_dtype` (bf16 by
    default, ~5e-2 max error vs f32 reference); pass jnp.float32 if needed.
    """
    N, Cin, H, W = x.shape
    Cout = weight.shape[0]
    K = kernel_size
    CK = Cin * K * K

    patches_t, Ho, Wo = extract_patches_nchw_t(
        x, K, stride, padding, dtype=patches_dtype)         # (N, CK, P)
    P = Ho * Wo

    # Pad P up to a 128 multiple: lane-dense, unmasked stores; the zero columns
    # do not perturb the statistics (we divide by the true P below).
    Pp = _round_up(P, 128)
    if Pp != P:
        patches_t = jnp.pad(patches_t, ((0, 0), (0, 0), (0, Pp - P)))

    # Cout tiling: pad to a multiple of 16 (bf16 sublane packing); for large
    # layers use 256-wide tiles so the MXU M dimension stays full.
    if Cout <= 256:
        Cout_p = _round_up(Cout, 16)
        TC = Cout_p
    else:
        TC = 256
        Cout_p = _round_up(Cout, TC)
    n_ct = Cout_p // TC

    w2d = weight.reshape(Cout, CK)
    if Cout_p != Cout:
        w2d = jnp.pad(w2d, ((0, Cout_p - Cout), (0, 0)))
    w2d = w2d.astype(patches_dtype)

    TP = _choose_tile_p(Pp)
    n_pt = Pp // TP

    kernel = functools.partial(_downsample_kernel, true_p=float(P))

    out = pl.pallas_call(
        kernel,
        out_shape=jax.ShapeDtypeStruct((N, Cout_p, Pp), jnp.float32),
        grid_spec=pltpu.PrefetchScalarGridSpec(
            num_scalar_prefetch=0,
            grid=(N, n_ct, n_pt),
            in_specs=[
                # patches tile: one sample, full CK, TP spatial positions
                pl.BlockSpec((1, CK, TP), lambda b, ct, pt: (b, 0, pt)),
                # weight tile: constant across pt -> DMA'd once per (b, ct)
                pl.BlockSpec((TC, CK), lambda b, ct, pt: (ct, 0)),
            ],
            # output block is resident across the (arbitrary) P-tile axis
            out_specs=pl.BlockSpec((1, TC, Pp), lambda b, ct, pt: (b, ct, 0)),
            scratch_shapes=[
                pltpu.VMEM((TC, 1), jnp.float32),   # running sum
                pltpu.VMEM((TC, 1), jnp.float32),   # running sum of squares
            ],
        ),
        compiler_params=pltpu.CompilerParams(
            dimension_semantics=("parallel", "parallel", "arbitrary"),
            vmem_limit_bytes=_vmem_limit_bytes()),
    )(patches_t, w2d)

    out = out[:, :Cout, :P]
    # (N, Cout, Ho*Wo) -> (N, Cout, Ho, Wo): contiguous reshape, no transpose.
    return out.reshape(N, Cout, Ho, Wo)


def downsample_reference(x, weight, kernel_size=4, stride=2, padding=1):
    """Pure-JAX f32 reference matching the PyTorch module semantics."""
    conv = lax.conv_general_dilated(
        x, weight,
        window_strides=(stride, stride),
        padding=((padding, padding), (padding, padding)),
        dimension_numbers=("NCHW", "OIHW", "NCHW"))
    mean = jnp.mean(conv, axis=(2, 3), keepdims=True)
    var = jnp.var(conv, axis=(2, 3), keepdims=True)
    normed = (conv - mean) / jnp.sqrt(var + EPS)
    return jnp.where(normed > 0, normed, NEG_SLOPE * normed)


if __name__ == "__main__":
    key = jax.random.PRNGKey(0)
    kx, kw = jax.random.split(key)

    N, Cin, Hs, Ws = 2, 4, 16, 16
    Cout, K = 8, 4

    x = jax.random.normal(kx, (N, Cin, Hs, Ws), dtype=jnp.float32)
    # Deterministic synthetic conv weight (Conv2d bias=False), PyTorch-like scale.
    fan_in = Cin * K * K
    bound = 1.0 / (fan_in ** 0.5)
    weight = jax.random.uniform(kw, (Cout, Cin, K, K),
                                dtype=jnp.float32, minval=-bound, maxval=bound)

    downsample_jit = jax.jit(
        downsample_pallas,
        static_argnames=("kernel_size", "stride", "padding", "patches_dtype"))
    y = jax.block_until_ready(downsample_jit(x, weight))

    y_ref = downsample_reference(x, weight)
    assert y.shape == (N, Cout, Hs // 2, Ws // 2), y.shape
    # bf16 MXU path -> loose-but-safe tolerance vs the f32 reference.
    err = float(jnp.max(jnp.abs(y - y_ref)))
    assert err < 5e-2, err

    print("KERNEL_OK")
</pallas_src>

<mosaic_0001>
module attributes {stable_mosaic.version = 11 : i64} {
  func.func @_downsample_kernel(%arg0: i32, %arg1: i32, %arg2: i32, %arg3: memref<1x64x128xbf16, #tpu.memory_space<vmem>>, %arg4: memref<16x64xbf16, #tpu.memory_space<vmem>>, %arg5: memref<1x16x128xf32, #tpu.memory_space<vmem>>, %arg6: memref<16x1xf32, #tpu.memory_space<vmem>>, %arg7: memref<16x1xf32, #tpu.memory_space<vmem>>) attributes {dimension_semantics = [#tpu.dimension_semantics<parallel>, #tpu.dimension_semantics<parallel>, #tpu.dimension_semantics<arbitrary>], iteration_bounds = array<i64: 2, 1, 1>, scalar_prefetch = 0 : i64, scratch_operands = 2 : i64, tpu.core_type = #tpu.core_type<tc>, window_params = [{transform_indices = @transform_0, window_bounds = array<i64: 1, 64, 128>}, {transform_indices = @transform_1, window_bounds = array<i64: 16, 64>}, {transform_indices = @transform_2, window_bounds = array<i64: 1, 16, 128>}]} {
    %c0_i32 = arith.constant 0 : i32
    %0 = arith.cmpi eq, %arg2, %c0_i32 : i32
    %1 = arith.extui %0 : i1 to i32
    %c0_i32_0 = arith.constant 0 : i32
    %2 = arith.cmpi ne, %1, %c0_i32_0 : i32
    scf.if %2 {
      %cst_19 = arith.constant 0.000000e+00 : f32
      %27 = vector.broadcast %cst_19 : f32 to vector<16x1xf32>
      %c0_20 = arith.constant 0 : index
      %c0_21 = arith.constant 0 : index
      %28 = vector.load %arg6[%c0_20, %c0_21] : memref<16x1xf32, #tpu.memory_space<vmem>>, vector<16x1xf32>
      tpu.vector_store %arg6[%c0_20, %c0_21], %27 {strides = array<i32>} : memref<16x1xf32, #tpu.memory_space<vmem>>, vector<16x1xf32>,
      %cst_22 = arith.constant 0.000000e+00 : f32
      %29 = vector.broadcast %cst_22 : f32 to vector<16x1xf32>
      %c0_23 = arith.constant 0 : index
      %c0_24 = arith.constant 0 : index
      %30 = vector.load %arg7[%c0_23, %c0_24] : memref<16x1xf32, #tpu.memory_space<vmem>>, vector<16x1xf32>
      tpu.vector_store %arg7[%c0_23, %c0_24], %29 {strides = array<i32>} : memref<16x1xf32, #tpu.memory_space<vmem>>, vector<16x1xf32>,
    } else {
    }
    %c0 = arith.constant 0 : index
    %c0_1 = arith.constant 0 : index
    %3 = vector.load %arg4[%c0, %c0_1] : memref<16x64xbf16, #tpu.memory_space<vmem>>, vector<16x64xbf16>
    %c0_2 = arith.constant 0 : index
    %c0_3 = arith.constant 0 : index
    %c0_4 = arith.constant 0 : index
    %4 = vector.load %arg3[%c0_2, %c0_3, %c0_4] : memref<1x64x128xbf16, #tpu.memory_space<vmem>>, vector<1x64x128xbf16>
    %5 = vector.shape_cast %4 : vector<1x64x128xbf16> to vector<64x128xbf16>
    %cst = arith.constant dense<0.000000e+00> : vector<16x128xf32>
    %6 = tpu.matmul %3, %5, %cst {dimension_numbers = #tpu.dot_dimension_numbers<[1], [0], [0], [1], [0, 0, 1, 1], [], []>} : vector<16x64xbf16>, vector<64x128xbf16>, vector<16x128xf32> -> vector<16x128xf32>
    %c0_5 = arith.constant 0 : index
    %c0_6 = arith.constant 0 : index
    %7 = vector.load %arg6[%c0_5, %c0_6] : memref<16x1xf32, #tpu.memory_space<vmem>>, vector<16x1xf32>
    %cst_7 = arith.constant dense<0.000000e+00> : vector<16xf32>
    %8 = vector.multi_reduction <add>, %6, %cst_7 [1] : vector<16x128xf32> to vector<16xf32>
    %9 = vector.shape_cast %8 : vector<16xf32> to vector<16x1xf32>
    %10 = arith.addf %7, %9 : vector<16x1xf32>
    %c0_8 = arith.constant 0 : index
    %c0_9 = arith.constant 0 : index
    %11 = vector.load %arg6[%c0_8, %c0_9] : memref<16x1xf32, #tpu.memory_space<vmem>>, vector<16x1xf32>
    tpu.vector_store %arg6[%c0_8, %c0_9], %10 {strides = array<i32>} : memref<16x1xf32, #tpu.memory_space<vmem>>, vector<16x1xf32>,
    %c0_10 = arith.constant 0 : index
    %c0_11 = arith.constant 0 : index
    %12 = vector.load %arg7[%c0_10, %c0_11] : memref<16x1xf32, #tpu.memory_space<vmem>>, vector<16x1xf32>
    %13 = arith.mulf %6, %6 : vector<16x128xf32>
    %cst_12 = arith.constant dense<0.000000e+00> : vector<16xf32>
    %14 = vector.multi_reduction <add>, %13, %cst_12 [1] : vector<16x128xf32> to vector<16xf32>
    %15 = vector.shape_cast %14 : vector<16xf32> to vector<16x1xf32>
    %16 = arith.addf %12, %15 : vector<16x1xf32>
    %c0_13 = arith.constant 0 : index
    %c0_14 = arith.constant 0 : index
    %17 = vector.load %arg7[%c0_13, %c0_14] : memref<16x1xf32, #tpu.memory_space<vmem>>, vector<16x1xf32>
    tpu.vector_store %arg7[%c0_13, %c0_14], %16 {strides = array<i32>} : memref<16x1xf32, #tpu.memory_space<vmem>>, vector<16x1xf32>,
    %c128_i32 = arith.constant 128 : i32
    %18 = arith.muli %arg2, %c128_i32 : i32
    %19 = tpu.assume_multiple %18, 128 : i32
    %c0_15 = arith.constant 0 : index
    %c0_16 = arith.constant 0 : index
    %20 = arith.index_cast %19 : i32 to index
    %21 = vector.load %arg5[%c0_15, %c0_16, %20] : memref<1x16x128xf32, #tpu.memory_space<vmem>>, vector<1x16x128xf32>
    %22 = vector.shape_cast %21 : vector<1x16x128xf32> to vector<16x128xf32>
    %23 = vector.shape_cast %6 : vector<16x128xf32> to vector<1x16x128xf32>
    tpu.vector_store %arg5[%c0_15, %c0_16, %20], %23 {strides = array<i32>} : memref<1x16x128xf32, #tpu.memory_space<vmem>>, vector<1x16x128xf32>,
    %c0_i32_17 = arith.constant 0 : i32
    %24 = arith.cmpi eq, %arg2, %c0_i32_17 : i32
    %25 = arith.extui %24 : i1 to i32
    %c0_i32_18 = arith.constant 0 : i32
    %26 = arith.cmpi ne, %25, %c0_i32_18 : i32
    scf.if %26 {
      %c0_19 = arith.constant 0 : index
      %c0_20 = arith.constant 0 : index
      %27 = vector.load %arg6[%c0_19, %c0_20] : memref<16x1xf32, #tpu.memory_space<vmem>>, vector<16x1xf32>
      %cst_21 = arith.constant 1.562500e-02 : f32
      %28 = vector.broadcast %cst_21 : f32 to vector<16x1xf32>
      %29 = arith.mulf %27, %28 : vector<16x1xf32>
      %c0_22 = arith.constant 0 : index
      %c0_23 = arith.constant 0 : index
      %30 = vector.load %arg7[%c0_22, %c0_23] : memref<16x1xf32, #tpu.memory_space<vmem>>, vector<16x1xf32>
      %cst_24 = arith.constant 1.562500e-02 : f32
      %31 = vector.broadcast %cst_24 : f32 to vector<16x1xf32>
      %32 = arith.mulf %30, %31 : vector<16x1xf32>
      %33 = arith.mulf %29, %29 : vector<16x1xf32>
      %34 = arith.subf %32, %33 : vector<16x1xf32>
      %cst_25 = arith.constant 0.000000e+00 : f32
      %35 = vector.broadcast %cst_25 : f32 to vector<16x1xf32>
      %36 = arith.maximumf %34, %35 : vector<16x1xf32>
      %cst_26 = arith.constant 9.99999974E-6 : f32
      %37 = vector.broadcast %cst_26 : f32 to vector<16x1xf32>
      %38 = arith.addf %36, %37 : vector<16x1xf32>
      %39 = math.rsqrt %38 : vector<16x1xf32>
      %c0_i32_27 = arith.constant 0 : i32
      %c128_i32_28 = arith.constant 128 : i32
      %40 = arith.muli %c0_i32_27, %c128_i32_28 : i32
      %41 = tpu.assume_multiple %40, 128 : i32
      %c0_29 = arith.constant 0 : index
      %c0_30 = arith.constant 0 : index
      %42 = arith.index_cast %41 : i32 to index
      %43 = vector.load %arg5[%c0_29, %c0_30, %42] : memref<1x16x128xf32, #tpu.memory_space<vmem>>, vector<1x16x128xf32>
      %44 = vector.shape_cast %43 : vector<1x16x128xf32> to vector<16x128xf32>
      %45 = vector.broadcast %29 : vector<16x1xf32> to vector<16x128xf32>
      %46 = arith.subf %44, %45 : vector<16x128xf32>
      %47 = vector.broadcast %39 : vector<16x1xf32> to vector<16x128xf32>
      %48 = arith.mulf %46, %47 : vector<16x128xf32>
      %cst_31 = arith.constant 0.000000e+00 : f32
      %49 = vector.broadcast %cst_31 : f32 to vector<16x128xf32>
      %50 = arith.cmpf ogt, %48, %49 : vector<16x128xf32>
      %cst_32 = arith.constant 0.00999999977 : f32
      %51 = vector.broadcast %cst_32 : f32 to vector<16x128xf32>
      %52 = arith.mulf %51, %48 : vector<16x128xf32>
      %53 = arith.select %50, %48, %52 : vector<16x128xi1>, vector<16x128xf32>
      %c0_33 = arith.constant 0 : index
      %c0_34 = arith.constant 0 : index
      %54 = arith.index_cast %41 : i32 to index
      %55 = vector.load %arg5[%c0_33, %c0_34, %54] : memref<1x16x128xf32, #tpu.memory_space<vmem>>, vector<1x16x128xf32>
      %56 = vector.shape_cast %55 : vector<1x16x128xf32> to vector<16x128xf32>
      %57 = vector.shape_cast %53 : vector<16x128xf32> to vector<1x16x128xf32>
      tpu.vector_store %arg5[%c0_33, %c0_34, %54], %57 {strides = array<i32>} : memref<1x16x128xf32, #tpu.memory_space<vmem>>, vector<1x16x128xf32>,
      %c1_i32 = arith.constant 1 : i32
    } else {
    }
    return
  }
  func.func @transform_0(%arg0: i32, %arg1: i32, %arg2: i32) -> (i32, i32, i32) {
    %c0_i32 = arith.constant 0 : i32
    %c0_i32_0 = arith.constant 0 : i32
    return %arg0, %c0_i32, %arg2 : i32, i32, i32
  }
  func.func @transform_1(%arg0: i32, %arg1: i32, %arg2: i32) -> (i32, i32) {
    %c0_i32 = arith.constant 0 : i32
    %c0_i32_0 = arith.constant 0 : i32
    return %arg1, %c0_i32 : i32, i32
  }
  func.func @transform_2(%arg0: i32, %arg1: i32, %arg2: i32) -> (i32, i32, i32) {
    %c0_i32 = arith.constant 0 : i32
    %c0_i32_0 = arith.constant 0 : i32
    return %arg0, %arg1, %c0_i32 : i32, i32, i32
  }
}

</mosaic_0001>

<llo_original>
// kernel: downsample_pallas.1
$region0: #{downsample_pallas.1}
  #allocation0 [shape = 'u32[]', space=smem, size = 0x4, offset = 0x4, fixed_abs, tag = 'smem constant byte address 0x4 - core index']
  #allocation1 [shape = 'u32[144,128]{1,0:T(1,128)}', space=vmem, size = 0x12000, scoped, tag = 'internal scratch']
  #allocation2 [shape = 'f32[16,1]{1,0:T(8,128)}', space=vmem, size = 0x2000, scoped, tag = 'scratch operand']
  #allocation3 [shape = 'f32[16,1]{1,0:T(8,128)}', space=vmem, size = 0x2000, scoped, tag = 'scratch operand']
  %s0 = inlined_call_operand.vmem [shape: bf16[2,64,128], index: 0, kind: input, shape index: {}]
  %s1 = inlined_call_operand.vmem [shape: bf16[16,64], index: 1, kind: input, shape index: {}]
  %s2 = inlined_call_operand.vmem [shape: f32[2,16,128], index: 2, kind: output, shape index: {}]
  %s3 = sld [smem:[#allocation0]]
  $region49: #{downsample_pallas.1} parent=0
    _
  %s5 = ssub.s32 1, %s3
  %s6 = scalar_select 0, %s5, %s3
  loop: start=0, step=1, limit=4
  $region2: #{downsample_pallas.1} parent=0 // loop_pre_header
    _
  $region3: #{downsample_pallas.1} parent=0 // loop_header
    %s8 = sphi 0, %s12
    %p9 = scmp.ge.s32.totalorder %s8, 4
    %s15 = sphi 0, %s34
    %s16 = sphi 0, %s30
    %s17 = sphi 0, %s26
    %s18 = sphi 0, %s15
    %s19 = sphi 0, %s16
    %s20 = sphi 0, %s17
    %s21 = sphi 0, %s18
    %s22 = sphi 0, %s19
    %s23 = sphi 0, %s20
    %s39 = sphi 0, %s41
    %s42 = sphi 0, %s39
    %s43 = sphi 0, %s42
    %s59 = sphi 0, %s43
    %s65 = sphi 0, %s67
    %s68 = sphi 0, %s65
    %s69 = sphi 0, %s68
    %s85 = sphi 0, %s69
    %s93 = sphi 0, %s95
    %s96 = sphi 0, %s93
    %s97 = sphi 0, %s96
    %s113 = sphi 0, %s97
  $region4: #{downsample_pallas.1} parent=0 // loop_header_branch
    %11 = sbr.rel (%p9) target = $region8
  $region5: #{downsample_pallas.1} parent=0 // loop_body
    %s13 = ssub.s32 %s8, 1
    %s14 = ssub.s32 %s8, 2
    %s24 = sadd.s32 1, %s17
    %p25 = scmp.ge.s32.totalorder %s24, 1
    %s26 = scalar_select %p25, 0, %s24
    %s27 = sadd.s32 1, %s16
    %s28 = scalar_select %p25, %s27, %s16
    %p29 = scmp.ge.s32.totalorder %s28, 1
    %s30 = scalar_select %p29, 0, %s28
    %s31 = sadd.s32 1, %s15
    %s32 = scalar_select %p29, %s31, %s15
    %p33 = scmp.ge.s32.totalorder %s32, 2
    %s34 = scalar_select %p33, 0, %s32
    %s35 = ssub.s32 %s15, %s34
    %s36 = ssub.s32 %s17, %s26
    %s37 = sor.u32 %s35, %s36
    %p38 = scmp.eq.s32.totalorder %s37, 0
    %s40 = sadd.s32 %s39, 1
    %s41 = scalar_select %p38, %s39, %s40
    %p44 = pneg %p38
    %p45 = scmp.eq.s32.totalorder %s8, 1
    %p46 = por %p44, %p45
    %p47 = scmp.ne.s32.totalorder %s39, %s42
    %p48 = scmp.eq.s32.totalorder %s8, 0
    %p49 = por %p47, %p48
    %p50 = scmp.ne.s32.totalorder %s39, %s42
    %p51 = scmp.eq.s32.totalorder %s13, 1
    %p52 = por %p50, %p51
    %p53 = scmp.ne.s32.totalorder %s42, %s43
    %p54 = scmp.eq.s32.totalorder %s13, 0
    %p55 = por %p53, %p54
    %p56 = scmp.ne.s32.totalorder %s42, %s43
    %p57 = scmp.eq.s32.totalorder %s14, 1
    %p58 = por %p56, %p57
    %p60 = scmp.ne.s32.totalorder %s43, %s59
    %p61 = scmp.eq.s32.totalorder %s14, 0
    %p62 = por %p60, %p61
    %s63 = ssub.s32 %s16, %s30
    %p64 = scmp.eq.s32.totalorder %s63, 0
    %s66 = sadd.s32 %s65, 1
    %s67 = scalar_select %p64, %s65, %s66
    %p70 = pneg %p64
    %p71 = scmp.eq.s32.totalorder %s8, 1
    %p72 = por %p70, %p71
    %p73 = scmp.ne.s32.totalorder %s65, %s68
    %p74 = scmp.eq.s32.totalorder %s8, 0
    %p75 = por %p73, %p74
    %p76 = scmp.ne.s32.totalorder %s65, %s68
    %p77 = scmp.eq.s32.totalorder %s13, 1
    %p78 = por %p76, %p77
    %p79 = scmp.ne.s32.totalorder %s68, %s69
    %p80 = scmp.eq.s32.totalorder %s13, 0
    %p81 = por %p79, %p80
    %p82 = scmp.ne.s32.totalorder %s68, %s69
    %p83 = scmp.eq.s32.totalorder %s14, 1
    %p84 = por %p82, %p83
    %p86 = scmp.ne.s32.totalorder %s69, %s85
    %p87 = scmp.eq.s32.totalorder %s14, 0
    %p88 = por %p86, %p87
    %s89 = ssub.s32 %s15, %s34
    %s90 = ssub.s32 %s16, %s30
    %s91 = sor.u32 %s89, %s90
    %p92 = scmp.eq.s32.totalorder %s91, 0
    %s94 = sadd.s32 %s93, 1
    %s95 = scalar_select %p92, %s93, %s94
    %p98 = pneg %p92
    %p99 = scmp.eq.s32.totalorder %s8, 1
    %p100 = por %p98, %p99
    %p101 = scmp.ne.s32.totalorder %s93, %s96
    %p102 = scmp.eq.s32.totalorder %s8, 0
    %p103 = por %p101, %p102
    %p104 = scmp.ne.s32.totalorder %s93, %s96
    %p105 = scmp.eq.s32.totalorder %s13, 1
    %p106 = por %p104, %p105
    %p107 = scmp.ne.s32.totalorder %s96, %s97
    %p108 = scmp.eq.s32.totalorder %s13, 0
    %p109 = por %p107, %p108
    %p110 = scmp.ne.s32.totalorder %s96, %s97
    %p111 = scmp.eq.s32.totalorder %s14, 1
    %p112 = por %p110, %p111
    %p114 = scmp.ne.s32.totalorder %s97, %s113
    %p115 = scmp.eq.s32.totalorder %s14, 0
    %p116 = por %p114, %p115
    %p117 = scmp.le.s32.totalorder 1, %s8
    %p118 = scmp.lt.s32.totalorder %s8, 3
    %p119 = pnand %p117, %p118
    %p120 = pneg %p119
    // Predicated region
    $region9: #{downsample_pallas.1} parent=5 // pred_check
      _
    $region10: #{downsample_pallas.1} parent=5 // pred_check_branch
      %122 = sbr.rel (%p119) target = $region12
    $region11: #{downsample_pallas.1} parent=5 // pred_region
      %s123 = ssub.s32 %s8, 1
      // Predicated region
      $region13: #{downsample_pallas.1} parent=11 // pred_check
        %p124 = pneg %p81
      $region14: #{downsample_pallas.1} parent=11 // pred_check_branch
        %126 = sbr.rel (%p124) target = $region16
      $region15: #{downsample_pallas.1} parent=11 // pred_region
        %s127 = smul.u32 2, %s19
        %p128 = scmp.lt.s32.totalorder %s127, 1
        %s129 = scalar_select %p128, %s127, 1
        %s130 = smul.addr %s129, 4
        %s131 = scalar_lea.vmem %s1, %s130
        %s132 = smul.u32 2, %s19
      $region16: #{downsample_pallas.1} parent=11 // pred_fallthru
        _
    $region12: #{downsample_pallas.1} parent=5 // pred_fallthru
      _
    %p133 = scmp.lt.s32.totalorder %s8, 2
    // Predicated region
    $region17: #{downsample_pallas.1} parent=5 // pred_check
      %p134 = pneg %p133
    $region18: #{downsample_pallas.1} parent=5 // pred_check_branch
      %136 = sbr.rel (%p134) target = $region20
    $region19: #{downsample_pallas.1} parent=5 // pred_region
      // Predicated region
      $region21: #{downsample_pallas.1} parent=19 // pred_check
        %p137 = pneg %p49
      $region22: #{downsample_pallas.1} parent=19 // pred_check_branch
        %139 = sbr.rel (%p137) target = $region24
      $region23: #{downsample_pallas.1} parent=19 // pred_region
        %p140 = scmp.lt.s32.totalorder %s15, 1
        %s141 = scalar_select %p140, %s15, 1
        %p142 = scmp.lt.s32.totalorder %s17, 0
        %s143 = scalar_select %p142, %s17, 0
        %s144 = smul.addr %s141, 8
        %s145 = sadd.s32 %s143, %s144
        %s146 = smul.addr %s145, 4
        %s147 = scalar_lea.vmem %s0, %s146
      $region24: #{downsample_pallas.1} parent=19 // pred_fallthru
        _
    $region20: #{downsample_pallas.1} parent=5 // pred_fallthru
      _
    %p148 = scmp.le.s32.totalorder 1, %s8
    %p149 = scmp.lt.s32.totalorder %s8, 3
    %p150 = pnand %p148, %p149
    %p151 = pneg %p150
    // Predicated region
    $region25: #{downsample_pallas.1} parent=5 // pred_check
      _
    $region26: #{downsample_pallas.1} parent=5 // pred_check_branch
      %153 = sbr.rel (%p150) target = $region28
    $region27: #{downsample_pallas.1} parent=5 // pred_region
      %s154 = ssub.s32 %s8, 1
      %p155 = scmp.lt.s32.totalorder %s18, 1
      %s156 = scalar_select %p155, %s18, 1
      %p157 = scmp.lt.s32.totalorder %s20, 0
      %s158 = scalar_select %p157, %s20, 0
      %s159 = smul.addr %s156, 8
      %s160 = sadd.s32 %s158, %s159
      %s161 = smul.addr %s160, 4
      %s162 = scalar_lea.vmem %s0, %s161
      %p163 = pneg %p55
      %p164 = pneg %p52
      %s165 = smul.u32 2, %s19
      %p166 = scmp.lt.s32.totalorder %s165, 1
      %s167 = scalar_select %p166, %s165, 1
      %s168 = smul.addr %s167, 4
      %s169 = scalar_lea.vmem %s1, %s168
      %p170 = pneg %p81
      %p171 = pneg %p78
      %p172 = pneg %p109
      %p173 = pneg %p106
      %s174 = smul.u32 2, %s19
      %p175 = scmp.lt.s32.totalorder %s18, 1
      %s176 = scalar_select %p175, %s18, 1
      %p177 = scmp.lt.s32.totalorder %s174, 1
      %s178 = scalar_select %p177, %s174, 1
      %s179 = smul.addr %s176, 2
      %s180 = sadd.s32 %s178, %s179
      %s181 = smul.addr %s180, 8
      %s182 = scalar_lea.vmem %s2, %s181
      %p183 = scmp.lt.s32.totalorder %s18, 1
      %s184 = scalar_select %p183, %s18, 1
      %p185 = scmp.lt.s32.totalorder %s20, 0
      %s186 = scalar_select %p185, %s20, 0
      %s187 = smul.addr %s184, 8
      %s188 = sadd.s32 %s186, %s187
      %s189 = smul.addr %s188, 4
      %s190 = scalar_lea.vmem %s0, %s189
      %s191 = smul.u32 2, %s19
      %p192 = scmp.lt.s32.totalorder %s191, 1
      %s193 = scalar_select %p192, %s191, 1
      %s194 = smul.addr %s193, 4
      %s195 = scalar_lea.vmem %s1, %s194
      %s196 = smul.u32 2, %s19
      %s197 = smul.u32 2, %s19
      %p198 = scmp.lt.s32.totalorder %s18, 1
      %s199 = scalar_select %p198, %s18, 1
      %p200 = scmp.lt.s32.totalorder %s197, 1
      %s201 = scalar_select %p200, %s197, 1
      %s202 = smul.addr %s199, 2
      %s203 = sadd.s32 %s201, %s202
      %s204 = smul.addr %s203, 8
      %s205 = scalar_lea.vmem %s2, %s204
      %s206 = smul.u32 2, %s19
      %p208 = scmp.eq.s32.totalorder %s20, 0
      // Predicated region
      $region29: #{downsample_pallas.1} parent=27 // pred_check
        %p209 = pneg %p208
      $region30: #{downsample_pallas.1} parent=27 // pred_check_branch
        %211 = sbr.rel (%p209) target = $region32
      $region31: #{downsample_pallas.1} parent=27 // pred_region
        %vm212 = vcmask 7168
        %213 = vst.msk [vmem:[#allocation2] sm:$0xff] %vm212, 0.0
        %214 = vst.msk [vmem:[#allocation2 + $0x8] sm:$0xff] %vm212, 0.0
        %215 = vst.msk [vmem:[#allocation3] sm:$0xff] %vm212, 0.0
        %216 = vst.msk [vmem:[#allocation3 + $0x8] sm:$0xff] %vm212, 0.0
      $region32: #{downsample_pallas.1} parent=27 // pred_fallthru
        _
      %v217 = vld [vmem:[%s195] sm:$0xf]
      %v218 = vld [vmem:[%s195 + $0x4] sm:$0xf]
      %v219 = vld [vmem:[%s190] sm:$0xf]
      %v220 = vld [vmem:[%s190 + $0x4] sm:$0xf]
      %v221 = vld [vmem:[%s190 + $0x8] sm:$0xf]
      %v222 = vld [vmem:[%s190 + $0xc] sm:$0xf]
      %v223 = vld [vmem:[%s190 + $0x10] sm:$0xf]
      %v224 = vld [vmem:[%s190 + $0x14] sm:$0xf]
      %v225 = vld [vmem:[%s190 + $0x18] sm:$0xf]
      %v226 = vld [vmem:[%s190 + $0x1c] sm:$0xf]
      %v229 = vunpack.c.l.b16 %v217
      %v230 = vunpack.c.l.b16 %v218
      %v231 = vpack.c.b16 %v230, %v229
      %v240 = vunpack.c.l.b16 %v219
      %v241 = vunpack.c.l.b16 %v220
      %v242 = vunpack.c.l.b16 %v221
      %v243 = vunpack.c.l.b16 %v222
      %v244 = vunpack.c.l.b16 %v223
      %v245 = vunpack.c.l.b16 %v224
      %v246 = vunpack.c.l.b16 %v225
      %v247 = vunpack.c.l.b16 %v226
      %v248 = vpack.c.b16 %v241, %v240
      %v249 = vpack.c.b16 %v243, %v242
      %v250 = vpack.c.b16 %v245, %v244
      %v251 = vpack.c.b16 %v247, %v246
      %vm256 = vcmask 523264
      %v258 = vsel %vm256, %v231, 0
      %260 = vmatprep.subr.bf16.mxu0 0
      %261 = vmatpush1.bf16.msra.mxu0 0
      %262 = vmatprep.subr.bf16.mxu0 0
      %263 = vmatpush1.bf16.msra.mxu0 0
      %264 = vmatprep.subr.bf16.mxu0 0
      %265 = vmatpush1.bf16.msra.mxu0 0
      %266 = vmatprep.subr.bf16.mxu0 0
      %267 = vmatpush1.bf16.msra.mxu0 0
      %268 = vmatprep.subr.bf16.mxu0 0
      %269 = vmatpush1.bf16.msra.mxu0 %v251
      %270 = vmatprep.subr.bf16.mxu0 0
      %271 = vmatpush1.bf16.msra.mxu0 %v250
      %272 = vmatprep.subr.bf16.mxu0 0
      %273 = vmatpush1.bf16.msra.mxu0 %v249
      %274 = vmatprep.subr.bf16.mxu0 0
      %275 = vmatpush1.bf16.msra.mxu0 %v248
      %276 = vmatprep.subr.bf16.mxu0 0
      %277 = vmatpush2.bf16.msra.mxu0 0
      %278 = vmatprep.subr.bf16.mxu0 0
      %279 = vmatpush2.bf16.msra.mxu0 0
      %280 = vmatprep.subr.bf16.mxu0 0
      %281 = vmatpush2.bf16.msra.mxu0 0
      %282 = vmatprep.subr.bf16.mxu0 0
      %283 = vmatpush2.bf16.msra.mxu0 0
      %284 = vmatprep.subr.bf16.mxu0 0
      %285 = vmatpush2.bf16.msra.mxu0 0
      %286 = vmatprep.subr.bf16.mxu0 0
      %287 = vmatpush2.bf16.msra.mxu0 0
      %288 = vmatprep.subr.bf16.mxu0 0
      %289 = vmatpush2.bf16.msra.mxu0 0
      %290 = vmatprep.subr.bf16.mxu0 0
      %291 = vmatpush2.bf16.msra.mxu0 0
      %292 = vmatprep.mubr.bf16.mxu0 0
      %293 = vmatmul.mubr.bf16.gmra.mxu0 %v258
      %v294 = vpop.f32.mrf.mxu0
      %v295 = vadd.f32 0.0, %v294
      %v296 = vpop.f32.mrf.mxu0
      %v297 = vpop.f32.mrf.mxu0
      %v298 = vadd.f32 0.0, %v297
      %v299 = vpop.f32.mrf.mxu0
      %300 = vdwg.mxu0
      %v301 = vld [vmem:[#allocation2] sm:$0xff]
      %v302 = vld [vmem:[#allocation2 + $0x8] sm:$0xff]
      %303 = vadd.xlane.f32.xlu0 %v295
      %v304 = vpop.xlane.xlu0 %303
      %305 = vadd.xlane.f32.xlu0 %v298
      %v306 = vpop.xlane.xlu0 %305
      %v307 = vadd.f32 %v301, %v304
      %v308 = vadd.f32 %v302, %v306
      %vm309 = vcmask 7168
      %310 = vst.msk [vmem:[#allocation2] sm:$0xff] %vm309, %v307
      %311 = vst.msk [vmem:[#allocation2 + $0x8] sm:$0xff] %vm309, %v308
      %v312 = vld [vmem:[#allocation3] sm:$0xff]
      %v313 = vld [vmem:[#allocation3 + $0x8] sm:$0xff]
      %v314 = vmul.f32 %v295, %v295
      %v315 = vmul.f32 %v298, %v298
      %316 = vadd.xlane.f32.xlu0 %v314
      %v317 = vpop.xlane.xlu0 %316
      %318 = vadd.xlane.f32.xlu0 %v315
      %v319 = vpop.xlane.xlu0 %318
      %v320 = vadd.f32 %v312, %v317
      %v321 = vadd.f32 %v313, %v319
      %322 = vst.msk [vmem:[#allocation3] sm:$0xff] %vm309, %v320
      %323 = vst.msk [vmem:[#allocation3 + $0x8] sm:$0xff] %vm309, %v321
      %s324 = smul.u32 %s20, 128
      %s325 = sshra.s32 %s324, 7
      %s326 = sand.u32 %s324, 127
      %s327 = scalar_lea.vmem %s205, %s325
      %328 = vst [vmem:[%s327] sm:$0xff] %v295
      %329 = vst [vmem:[%s327 + $0x8] sm:$0xff] %v298
      // Predicated region
      $region33: #{downsample_pallas.1} parent=27 // pred_check
        %p330 = pneg %p208
      $region34: #{downsample_pallas.1} parent=27 // pred_check_branch
        %332 = sbr.rel (%p330) target = $region36
      $region35: #{downsample_pallas.1} parent=27 // pred_region
        %v333 = vld [vmem:[#allocation2] sm:$0xff]
        %v334 = vld [vmem:[#allocation2 + $0x8] sm:$0xff]
        %v335 = vmul.f32 %v333, 0.015625
        %v336 = vmul.f32 %v334, 0.015625
        %v337 = vld [vmem:[#allocation3] sm:$0xff]
        %v338 = vld [vmem:[#allocation3 + $0x8] sm:$0xff]
        %v339 = vmul.f32 %v337, 0.015625
        %v340 = vmul.f32 %v338, 0.015625
        %v341 = vmul.f32 %v335, %v335
        %v342 = vmul.f32 %v336, %v336
        %v343 = vsub.f32 %v339, %v341
        %v344 = vsub.f32 %v340, %v342
        %v345 = vmax.f32 %v343, 0.0
        %v346 = vmax.f32 %v344, 0.0
        %v347 = vadd.f32 %v345, 1e-05
        %v348 = vadd.f32 %v346, 1e-05
        %v349 = vrsqrt.pop %v347
        %v350 = vrsqrt.pop %v348
        %v351 = vld [vmem:[%s205] sm:$0xff]
        %v352 = vld [vmem:[%s205 + $0x8] sm:$0xff]
        %354 = vset.pattern.permute.xlu0 0
        %355 = vperm.xlu0 %354, %v335
        %v356 = vpop.permute.xlu0 %355
        %359 = vset.pattern.permute.xlu0 0
        %360 = vperm.xlu0 %359, %v336
        %v361 = vpop.permute.xlu0 %360
        %v363 = vsub.f32 %v351, %v356
        %v364 = vsub.f32 %v352, %v361
        %366 = vset.pattern.permute.xlu0 0
        %367 = vperm.xlu0 %366, %v349
        %v368 = vpop.permute.xlu0 %367
        %371 = vset.pattern.permute.xlu0 0
        %372 = vperm.xlu0 %371, %v350
        %v373 = vpop.permute.xlu0 %372
        %v375 = vmul.f32 %v363, %v368
        %v376 = vmul.f32 %v364, %v373
        %vm377 = vcmp.gt.f32.partialorder %v375, 0.0
        %vm378 = vcmp.gt.f32.partialorder %v376, 0.0
        %v379 = vmul.f32 %v375, 0.01
        %v380 = vmul.f32 %v376, 0.01
        %v381 = vsel %vm377, %v375, %v379
        %v382 = vsel %vm378, %v376, %v380
        %383 = vst [vmem:[%s205] sm:$0xff] %v381
        %384 = vst [vmem:[%s205 + $0x8] sm:$0xff] %v382
      $region36: #{downsample_pallas.1} parent=27 // pred_fallthru
        _
      %s385 = smul.u32 2, %s19
      %p386 = scmp.lt.s32.totalorder %s18, 1
      %s387 = scalar_select %p386, %s18, 1
      %p388 = scmp.lt.s32.totalorder %s385, 1
      %s389 = scalar_select %p388, %s385, 1
      %s390 = smul.addr %s387, 2
      %s391 = sadd.s32 %s389, %s390
      %s392 = smul.addr %s391, 8
      %s393 = scalar_lea.vmem %s2, %s392
      // Predicated region
      $region37: #{downsample_pallas.1} parent=27 // pred_check
        %p394 = pneg %p106
      $region38: #{downsample_pallas.1} parent=27 // pred_check_branch
        %396 = sbr.rel (%p394) target = $region40
      $region39: #{downsample_pallas.1} parent=27 // pred_region
        %s397 = smul.u32 2, %s19
      $region40: #{downsample_pallas.1} parent=27 // pred_fallthru
        _
    $region28: #{downsample_pallas.1} parent=5 // pred_fallthru
      _
    %p398 = scmp.le.s32.totalorder 2, %s8
    // Predicated region
    $region41: #{downsample_pallas.1} parent=5 // pred_check
      %p399 = pneg %p398
    $region42: #{downsample_pallas.1} parent=5 // pred_check_branch
      %401 = sbr.rel (%p399) target = $region44
    $region43: #{downsample_pallas.1} parent=5 // pred_region
      %s402 = ssub.s32 %s8, 2
      // Predicated region
      $region45: #{downsample_pallas.1} parent=43 // pred_check
        %p403 = pneg %p112
      $region46: #{downsample_pallas.1} parent=43 // pred_check_branch
        %405 = sbr.rel (%p403) target = $region48
      $region47: #{downsample_pallas.1} parent=43 // pred_region
        %s406 = smul.u32 2, %s22
        %p407 = scmp.lt.s32.totalorder %s21, 1
        %s408 = scalar_select %p407, %s21, 1
        %p409 = scmp.lt.s32.totalorder %s406, 1
        %s410 = scalar_select %p409, %s406, 1
        %s411 = smul.addr %s408, 2
        %s412 = sadd.s32 %s410, %s411
        %s413 = smul.addr %s412, 8
        %s414 = scalar_lea.vmem %s2, %s413
      $region48: #{downsample_pallas.1} parent=43 // pred_fallthru
        _
    $region44: #{downsample_pallas.1} parent=5 // pred_fallthru
      _
  $region6: #{downsample_pallas.1} parent=0 // loop_footer
    %s12 = sadd.s32 1, %s8
  $region7: #{downsample_pallas.1} parent=0 // loop_footer_branch
    %7 = sbr.rel target = $region3
  $region8: #{downsample_pallas.1} parent=0 // loop_exit
    _

</llo_original>
